<compile_context>
chip_gen: v7x
topology: tpu7x:2x2x1
jax: 0.10.0
libtpu: 0.0.40
codegen_flags: <defaults>
</compile_context>

<pallas_src>
import functools
import math

import jax
import jax.numpy as jnp
from jax import lax
from jax.experimental import pallas as pl
from jax.experimental.pallas import tpu as pltpu


# --------------------------------------------------------------------------- #
# Tiling helpers
# --------------------------------------------------------------------------- #
def _sublane_multiple(dtype):
    # f32 -> 8, bf16/f16 -> 16, int8/fp8 -> 32 (sub-32-bit dtypes pack sublanes).
    return max(8, 32 // jnp.dtype(dtype).itemsize)


def _pick_tile(s, target, *, multiple=8):
    """Largest tile <= target that is a multiple of `multiple` and divides s (else s)."""
    if s <= target:
        return s
    t = (target // multiple) * multiple
    while t >= multiple:
        if s % t == 0:
            return t
        t -= multiple
    return s  # TODO(synk): masked/padded-tail path instead of one full-S block.


def _pick_lane_tile(n, target):
    """Largest lane tile <= target that is a multiple of 128 and divides n (else n)."""
    if n <= target:
        return n
    t = (target // 128) * 128
    while t >= 128:
        if n % t == 0:
            return t
        t -= 128
    return n


def _clamp_vmem(nbytes):
    # Keep the requested scoped-VMEM limit sane for all generations (v7x: 64 MiB).
    return int(min(max(nbytes, 32 << 20), 64 << 20))


# --------------------------------------------------------------------------- #
# 1) Fused QKV projection -> lane-dense (B, S, 3E) slab
# --------------------------------------------------------------------------- #
def _qkv_proj_kernel(x_ref, w_ref, b_ref, o_ref):
    # x_ref: (1, ts, E)   w_ref: (E, tn)   b_ref: (1, tn)   o_ref: (1, ts, tn)
    y = jnp.dot(x_ref[0], w_ref[...], preferred_element_type=jnp.float32)
    o_ref[0] = (y + b_ref[...]).astype(o_ref.dtype)   # single lane-dense store


def qkv_projection(x, w_qkv, b_qkv, *, seq_tile=512, n_tile=512):
    """x:(B,S,E) @ w_qkv:(E,3E) + b_qkv:(3E,) -> lane-dense slab (B,S,3E)."""
    B, S, E = x.shape
    N = w_qkv.shape[1]
    ts = _pick_tile(S, seq_tile, multiple=_sublane_multiple(x.dtype))
    tn = _pick_lane_tile(N, n_tile)
    itemsize = jnp.dtype(x.dtype).itemsize
    block_bytes = (ts * E + E * tn + tn + ts * tn) * itemsize
    return pl.pallas_call(
        _qkv_proj_kernel,
        out_shape=jax.ShapeDtypeStruct((B, S, N), x.dtype),
        grid_spec=pltpu.PrefetchScalarGridSpec(
            num_scalar_prefetch=0,
            grid=(B, S // ts, N // tn),
            in_specs=[
                pl.BlockSpec((1, ts, E), lambda b, si, ni: (b, si, 0)),
                pl.BlockSpec((E, tn), lambda b, si, ni: (0, ni)),
                pl.BlockSpec((1, tn), lambda b, si, ni: (0, ni)),
            ],
            out_specs=pl.BlockSpec((1, ts, tn), lambda b, si, ni: (b, si, ni)),
        ),
        compiler_params=pltpu.CompilerParams(
            dimension_semantics=("parallel", "parallel", "parallel"),
            vmem_limit_bytes=_clamp_vmem(2 * block_bytes + (4 << 20))),
    )(x, w_qkv, b_qkv.reshape(1, N))


# --------------------------------------------------------------------------- #
# 2) Flash-style scaled dot-product attention (lane-dense in, lane-dense out)
# --------------------------------------------------------------------------- #
def _flash_attn_kernel(q_ref, k_ref, v_ref, o_ref, qh_sc, m_sc, l_sc, acc_sc,
                       *, heads, d_k):
    # q_ref: (1, tq, Hg*d_k)  k_ref/v_ref: (1, tk, Hg*d_k)  o_ref: (1, tq, Hg*d_k)
    # qh_sc: (Hg, tq, d_k) native dtype; m/l: (Hg, tq, 1) f32; acc: (Hg, tq, d_k) f32
    ki = pl.program_id(3)

    def split_heads(x2d):
        # lane-dense (T, Hg*d_k) -> head-major (Hg, T, d_k): static lane slices +
        # leading-dim stack (XLU-side work in an otherwise idle slot).
        return jnp.stack(
            [x2d[:, h * d_k:(h + 1) * d_k] for h in range(heads)], axis=0)

    @pl.when(ki == 0)
    def _():
        m_sc[...] = jnp.full(m_sc.shape, -jnp.inf, dtype=m_sc.dtype)
        l_sc[...] = jnp.zeros(l_sc.shape, dtype=l_sc.dtype)
        acc_sc[...] = jnp.zeros(acc_sc.shape, dtype=acc_sc.dtype)
        # Q (already pre-scaled by 1/sqrt(d_k) via the folded weights) is resident
        # across the ki reduction axis: head-split once and cache in VMEM scratch.
        qh_sc[...] = split_heads(q_ref[0])

    k = split_heads(k_ref[0])                                   # (Hg, tk, d_k)
    v = split_heads(v_ref[0])                                   # (Hg, tk, d_k)
    q = qh_sc[...]                                              # (Hg, tq, d_k)

    # scores: contract d_k of both operands (no K transpose), f32 MXU accumulation.
    s = lax.dot_general(q, k, (((2,), (2,)), ((0,), (0,))),
                        preferred_element_type=jnp.float32)     # (Hg, tq, tk)

    m_prev = m_sc[...]
    m_new = jnp.maximum(m_prev, jnp.max(s, axis=-1, keepdims=True))
    alpha = jnp.exp(m_prev - m_new)
    # TODO(synk): on v6e/v7x a bf16 exp (~2x EUP throughput) is possible at ~1e-3
    # softmax error; kept f32 here for accuracy parity (and required on v5e).
    p = jnp.exp(s - m_new)

    l_sc[...] = alpha * l_sc[...] + jnp.sum(p, axis=-1, keepdims=True)
    pv = lax.dot_general(p.astype(v.dtype), v, (((2,), (1,)), ((0,), (0,))),
                         preferred_element_type=jnp.float32)    # (Hg, tq, d_k)
    acc_sc[...] = alpha * acc_sc[...] + pv
    m_sc[...] = m_new

    # TODO(synk): optional `mask` (masked_fill(mask==0, -1e9)) not plumbed; module default is mask=None.
    # TODO(synk): nn.Dropout on p_attn is identity in eval/inference mode; not applied here.

    @pl.when(ki == pl.num_programs(3) - 1)
    def _():
        inv_l = pl.reciprocal(l_sc[...], approx=True)           # (Hg, tq, 1)
        ctx = acc_sc[...] * inv_l                               # (Hg, tq, d_k) f32
        # Merge heads back to a lane-dense (tq, Hg*d_k) slab -> one wide store.
        # Runs once per output tile (epilogue only); concat-of-slices is the
        # safely-lowering relayout form (einshape grouping left as a follow-up).
        out = jnp.concatenate([ctx[h] for h in range(heads)], axis=-1)
        o_ref[0] = out.astype(o_ref.dtype)


def _choose_head_groups(heads, d_k, tq, tk, itemsize, *, budget_bytes=40 << 20):
    """Smallest head-group count whose per-step blocks + scratch fit the budget."""
    E = heads * d_k
    valid = [g for g in range(1, heads + 1)
             if heads % g == 0 and (g == 1 or (E // g) % 128 == 0)]
    for g in valid:
        Eg = E // g
        hg = heads // g
        blocks = 2 * (2 * (tq * Eg + tk * Eg) * itemsize)       # double-buffered q/out/k/v
        scratch = (2 * hg * tq + hg * tq * d_k) * 4 + hg * tq * d_k * itemsize
        if blocks + scratch + (4 << 20) <= budget_bytes:
            return g
    return valid[-1]


def scaled_dot_product_attention(qkv, *, heads, d_k, q_tile=512, k_tile=512,
                                 head_groups=None):
    """qkv: lane-dense (B, S, 3*E) slab with E = heads*d_k -> context (B, S, E)."""
    B, S, N = qkv.shape
    E = heads * d_k
    assert N == 3 * E
    assert E % 128 == 0, "lane-dense attention path needs hidden_size % 128 == 0"

    sm = _sublane_multiple(qkv.dtype)
    tq = _pick_tile(S, q_tile, multiple=sm)
    tk = _pick_tile(S, k_tile, multiple=sm)
    itemsize = jnp.dtype(qkv.dtype).itemsize

    g = head_groups if head_groups is not None else _choose_head_groups(
        heads, d_k, tq, tk, itemsize)
    assert heads % g == 0 and (E // g) % 128 == 0
    Eg = E // g            # lane width of one head group
    Hg = heads // g        # heads carried per grid step

    kernel = functools.partial(_flash_attn_kernel, heads=Hg, d_k=d_k)

    blocks = 2 * (2 * (tq * Eg + tk * Eg) * itemsize)
    scratch = (2 * Hg * tq + Hg * tq * d_k) * 4 + Hg * tq * d_k * itemsize
    vmem_limit = _clamp_vmem(blocks + scratch + (4 << 20))

    # Three views of the same lane-dense slab: Q / K / V thirds.
    q_spec = pl.BlockSpec((1, tq, Eg), lambda b, gi, qi, ki: (b, qi, gi))
    k_spec = pl.BlockSpec((1, tk, Eg), lambda b, gi, qi, ki: (b, ki, g + gi))
    v_spec = pl.BlockSpec((1, tk, Eg), lambda b, gi, qi, ki: (b, ki, 2 * g + gi))

    return pl.pallas_call(
        kernel,
        out_shape=jax.ShapeDtypeStruct((B, S, E), qkv.dtype),
        grid_spec=pltpu.PrefetchScalarGridSpec(
            num_scalar_prefetch=0,
            grid=(B, g, S // tq, S // tk),
            in_specs=[q_spec, k_spec, v_spec],
            out_specs=pl.BlockSpec((1, tq, Eg), lambda b, gi, qi, ki: (b, qi, gi)),
            scratch_shapes=[
                pltpu.VMEM((Hg, tq, d_k), qkv.dtype),    # head-major Q cache
                pltpu.VMEM((Hg, tq, 1), jnp.float32),    # running max m
                pltpu.VMEM((Hg, tq, 1), jnp.float32),    # running denom l
                pltpu.VMEM((Hg, tq, d_k), jnp.float32),  # running accumulator
            ],
        ),
        compiler_params=pltpu.CompilerParams(
            dimension_semantics=("parallel", "parallel", "parallel", "arbitrary"),
            vmem_limit_bytes=vmem_limit),
    )(qkv, qkv, qkv)


# --------------------------------------------------------------------------- #
# 3) Output projection
# --------------------------------------------------------------------------- #
def _linear_kernel(x_ref, w_ref, b_ref, o_ref):
    acc = jnp.dot(x_ref[...], w_ref[...], preferred_element_type=jnp.float32)
    o_ref[...] = (acc + b_ref[...]).astype(o_ref.dtype)


def linear(x2d, w, b, *, row_tile=512, n_tile=512):
    M, K = x2d.shape
    N = w.shape[1]
    tm = _pick_tile(M, row_tile, multiple=_sublane_multiple(x2d.dtype))
    tn = _pick_lane_tile(N, n_tile)
    itemsize = jnp.dtype(x2d.dtype).itemsize
    block_bytes = (tm * K + K * tn + tn + tm * tn) * itemsize
    return pl.pallas_call(
        _linear_kernel,
        out_shape=jax.ShapeDtypeStruct((M, N), x2d.dtype),
        grid_spec=pltpu.PrefetchScalarGridSpec(
            num_scalar_prefetch=0,
            grid=(M // tm, N // tn),
            in_specs=[
                pl.BlockSpec((tm, K), lambda i, j: (i, 0)),
                pl.BlockSpec((K, tn), lambda i, j: (0, j)),
                pl.BlockSpec((1, tn), lambda i, j: (0, j)),
            ],
            out_specs=pl.BlockSpec((tm, tn), lambda i, j: (i, j)),
        ),
        compiler_params=pltpu.CompilerParams(
            dimension_semantics=("parallel", "parallel"),
            vmem_limit_bytes=_clamp_vmem(2 * block_bytes + (4 << 20))),
    )(x2d, w, b.reshape(1, N))


# --------------------------------------------------------------------------- #
# Full MultiHeadAttention forward (eval mode, mask=None)
# --------------------------------------------------------------------------- #
def multi_head_attention(inputs, w_qkv, b_qkv, w_o, b_o, *, heads):
    """inputs: (B, S, hidden) -> (B, S, hidden)."""
    B, S, E = inputs.shape
    d_k = E // heads
    # Fold the 1/sqrt(d_k) score scale into the Q third of the fused QKV weights
    # and bias (one-time constant fold under jit; removes per-ki-step VPU scaling
    # of the resident Q block inside the attention kernel).
    scale = 1.0 / math.sqrt(d_k)
    col_scale = jnp.concatenate(
        [jnp.full((E,), scale, w_qkv.dtype), jnp.ones((2 * E,), w_qkv.dtype)])
    qkv = qkv_projection(inputs, w_qkv * col_scale[None, :], b_qkv * col_scale)
    ctx = scaled_dot_product_attention(qkv, heads=heads, d_k=d_k)   # (B, S, E)
    out = linear(ctx.reshape(B * S, E), w_o, b_o)                   # (B*S, E)
    return out.reshape(B, S, E)


if __name__ == "__main__":
    # Small shapes consistent with the module: hidden=128, heads=4 -> d_k=32.
    B, H, S, E = 2, 4, 8, 128
    D = E // H

    root = jax.random.PRNGKey(0)
    kx, kq, kk, kv, ko = jax.random.split(root, 5)
    scale_w = 1.0 / math.sqrt(E)
    x = jax.random.normal(kx, (B, S, E), dtype=jnp.float32)
    w_q = jax.random.normal(kq, (E, E), dtype=jnp.float32) * scale_w
    w_k = jax.random.normal(kk, (E, E), dtype=jnp.float32) * scale_w
    w_v = jax.random.normal(kv, (E, E), dtype=jnp.float32) * scale_w
    w_o = jax.random.normal(ko, (E, E), dtype=jnp.float32) * scale_w
    b_q = 0.01 * jnp.ones((E,), jnp.float32)
    b_k = 0.02 * jnp.ones((E,), jnp.float32)
    b_v = 0.03 * jnp.ones((E,), jnp.float32)
    b_o = 0.04 * jnp.ones((E,), jnp.float32)

    w_qkv = jnp.concatenate([w_q, w_k, w_v], axis=1)   # (E, 3E)
    b_qkv = jnp.concatenate([b_q, b_k, b_v], axis=0)   # (3E,)

    out = multi_head_attention(x, w_qkv, b_qkv, w_o, b_o, heads=H)
    jax.block_until_ready(out)

    # Plain-JAX reference of the same forward pass.
    q_ref = x @ w_q + b_q
    k_ref = x @ w_k + b_k
    v_ref = x @ w_v + b_v
    qh = q_ref.reshape(B, S, H, D).transpose(0, 2, 1, 3)
    kh = k_ref.reshape(B, S, H, D).transpose(0, 2, 1, 3)
    vh = v_ref.reshape(B, S, H, D).transpose(0, 2, 1, 3)
    scores = jnp.einsum("bhqd,bhkd->bhqk", qh, kh) / math.sqrt(D)
    p = jax.nn.softmax(scores, axis=-1)
    ctx = jnp.einsum("bhqk,bhkd->bhqd", p, vh)
    ctx = ctx.transpose(0, 2, 1, 3).reshape(B, S, H * D)
    ref = ctx @ w_o + b_o

    assert out.shape == (B, S, E)
    assert jnp.allclose(out, ref, atol=2e-2, rtol=2e-2), float(
        jnp.max(jnp.abs(out - ref)))
    print("KERNEL_OK")
</pallas_src>

<mosaic_0001>
module attributes {stable_mosaic.version = 11 : i64} {
  func.func @_qkv_proj_kernel(%arg0: i32, %arg1: i32, %arg2: i32, %arg3: memref<1x8x128xf32, #tpu.memory_space<vmem>>, %arg4: memref<128x384xf32, #tpu.memory_space<vmem>>, %arg5: memref<1x384xf32, #tpu.memory_space<vmem>>, %arg6: memref<1x8x384xf32, #tpu.memory_space<vmem>>) attributes {dimension_semantics = [#tpu.dimension_semantics<parallel>, #tpu.dimension_semantics<parallel>, #tpu.dimension_semantics<parallel>], iteration_bounds = array<i64: 2, 1, 1>, scalar_prefetch = 0 : i64, scratch_operands = 0 : i64, tpu.core_type = #tpu.core_type<tc>, window_params = [{transform_indices = @transform_0, window_bounds = array<i64: 1, 8, 128>}, {transform_indices = @transform_1, window_bounds = array<i64: 128, 384>}, {transform_indices = @transform_2, window_bounds = array<i64: 1, 384>}, {transform_indices = @transform_3, window_bounds = array<i64: 1, 8, 384>}]} {
    %c0 = arith.constant 0 : index
    %c0_0 = arith.constant 0 : index
    %c0_1 = arith.constant 0 : index
    %0 = vector.load %arg3[%c0, %c0_0, %c0_1] : memref<1x8x128xf32, #tpu.memory_space<vmem>>, vector<1x8x128xf32>
    %1 = vector.shape_cast %0 : vector<1x8x128xf32> to vector<8x128xf32>
    %c0_2 = arith.constant 0 : index
    %c0_3 = arith.constant 0 : index
    %2 = vector.load %arg4[%c0_2, %c0_3] : memref<128x384xf32, #tpu.memory_space<vmem>>, vector<128x384xf32>
    %cst = arith.constant dense<0.000000e+00> : vector<8x384xf32>
    %3 = tpu.matmul %1, %2, %cst {dimension_numbers = #tpu.dot_dimension_numbers<[1], [0], [0], [1], [0, 0, 1, 1], [], []>} : vector<8x128xf32>, vector<128x384xf32>, vector<8x384xf32> -> vector<8x384xf32>
    %c0_4 = arith.constant 0 : index
    %c0_5 = arith.constant 0 : index
    %4 = vector.load %arg5[%c0_4, %c0_5] : memref<1x384xf32, #tpu.memory_space<vmem>>, vector<1x384xf32>
    %5 = vector.broadcast %4 : vector<1x384xf32> to vector<8x384xf32>
    %6 = arith.addf %3, %5 : vector<8x384xf32>
    %c0_6 = arith.constant 0 : index
    %c0_7 = arith.constant 0 : index
    %c0_8 = arith.constant 0 : index
    %7 = vector.load %arg6[%c0_6, %c0_7, %c0_8] : memref<1x8x384xf32, #tpu.memory_space<vmem>>, vector<1x8x384xf32>
    %8 = vector.shape_cast %7 : vector<1x8x384xf32> to vector<8x384xf32>
    %9 = vector.shape_cast %6 : vector<8x384xf32> to vector<1x8x384xf32>
    tpu.vector_store %arg6[%c0_6, %c0_7, %c0_8], %9 {strides = array<i32>} : memref<1x8x384xf32, #tpu.memory_space<vmem>>, vector<1x8x384xf32>,
    return
  }
  func.func @transform_0(%arg0: i32, %arg1: i32, %arg2: i32) -> (i32, i32, i32) {
    %c0_i32 = arith.constant 0 : i32
    %c0_i32_0 = arith.constant 0 : i32
    return %arg0, %arg1, %c0_i32 : i32, i32, i32
  }
  func.func @transform_1(%arg0: i32, %arg1: i32, %arg2: i32) -> (i32, i32) {
    %c0_i32 = arith.constant 0 : i32
    %c0_i32_0 = arith.constant 0 : i32
    return %c0_i32, %arg2 : i32, i32
  }
  func.func @transform_2(%arg0: i32, %arg1: i32, %arg2: i32) -> (i32, i32) {
    %c0_i32 = arith.constant 0 : i32
    %c0_i32_0 = arith.constant 0 : i32
    return %c0_i32, %arg2 : i32, i32
  }
  func.func @transform_3(%arg0: i32, %arg1: i32, %arg2: i32) -> (i32, i32, i32) {
    %c0_i32 = arith.constant 0 : i32
    return %arg0, %arg1, %arg2 : i32, i32, i32
  }
}

</mosaic_0001>

<llo_original>
// kernel: tpu_custom_call.1
$region0: #{tpu_custom_call.1}
  #allocation0 [shape = 'u32[]', space=smem, size = 0x4, offset = 0x4, fixed_abs, tag = 'smem constant byte address 0x4 - core index']
  #allocation1 [shape = 'u32[144,128]{1,0:T(1,128)}', space=vmem, size = 0x12000, scoped, tag = 'internal scratch']
  %s0 = inlined_call_operand.hbm [shape: f32[2,8,128], index: 0, kind: input, shape index: {}]
  %s1 = inlined_call_operand.hbm [shape: f32[128,384], index: 1, kind: input, shape index: {}]
  %s2 = inlined_call_operand.vmem [shape: f32[1,384], index: 2, kind: input, shape index: {}]
  %s3 = inlined_call_operand.hbm [shape: f32[2,8,384], index: 3, kind: output, shape index: {}]
  %s4 = sld [smem:[#allocation0]]
  $region53: #{tpu_custom_call.1} parent=0
    _
  %s6 = ssub.s32 1, %s4
  %s7 = scalar_select 0, %s6, %s4
  $region1: #{tpu_custom_call.1} parent=0
    #allocation2 [shape = 'u8[8192]{0}', space=vmem, size = 0x2000, scoped, tag = 'input window, operand 0']
    #allocation3 [shape = 's32[2]{0}', space=sflag, size = 0x8, scoped, tag = 'scoped memory for tpu_custom_call.1']
    #allocation4 [shape = 's32[2]{0}', space=sflag, size = 0x8, scoped, tag = 'scoped memory for tpu_custom_call.1']
    #allocation5 [shape = 'u8[196608]{0}', space=vmem, size = 0x30000, scoped, tag = 'input window, operand 1, single buffered']
    #allocation6 [shape = 's32[1]{0}', space=sflag, size = 0x4, scoped, tag = 'scoped memory for tpu_custom_call.1']
    #allocation7 [shape = 'u8[24576]{0}', space=vmem, size = 0x6000, scoped, tag = 'output window, operand 0']
    %8 = vsyncpa [#allocation3], 0
    %s9 = scalar_lea.sflag [#allocation3], 1
    %10 = vsyncpa %s9, 0
    %11 = vsyncpa [#allocation6], 0
    %12 = vsyncpa [#allocation4], 0
    %s13 = scalar_lea.sflag [#allocation4], 1
    %14 = vsyncpa %s13, 0
    loop: start=0, step=1, limit=4
    $region2: #{tpu_custom_call.1} parent=1 // loop_pre_header
      _
    $region3: #{tpu_custom_call.1} parent=1 // loop_header
      %s16 = sphi 0, %s20
      %p17 = scmp.ge.s32.totalorder %s16, 4
      %s23 = sphi 0, %s42
      %s24 = sphi 0, %s38
      %s25 = sphi 0, %s34
      %s26 = sphi 0, %s23
      %s27 = sphi 0, %s24
      %s28 = sphi 0, %s25
      %s29 = sphi 0, %s26
      %s30 = sphi 0, %s27
      %s31 = sphi 0, %s28
      %s47 = sphi 0, %s49
      %s50 = sphi 0, %s47
      %s51 = sphi 0, %s50
      %s67 = sphi 0, %s51
      %s73 = sphi 0, %s75
      %s76 = sphi 0, %s73
      %s77 = sphi 0, %s76
      %s93 = sphi 0, %s77
      %s99 = sphi 0, %s101
      %s102 = sphi 0, %s99
      %s103 = sphi 0, %s102
      %s119 = sphi 0, %s103
      %s129 = sphi 0, %s131
      %s132 = sphi 0, %s129
      %s133 = sphi 0, %s132
      %s149 = sphi 0, %s133
    $region4: #{tpu_custom_call.1} parent=1 // loop_header_branch
      %19 = sbr.rel (%p17) target = $region8
    $region5: #{tpu_custom_call.1} parent=1 // loop_body
      %s21 = ssub.s32 %s16, 1
      %s22 = ssub.s32 %s16, 2
      %s32 = sadd.s32 1, %s25
      %p33 = scmp.ge.s32.totalorder %s32, 1
      %s34 = scalar_select %p33, 0, %s32
      %s35 = sadd.s32 1, %s24
      %s36 = scalar_select %p33, %s35, %s24
      %p37 = scmp.ge.s32.totalorder %s36, 1
      %s38 = scalar_select %p37, 0, %s36
      %s39 = sadd.s32 1, %s23
      %s40 = scalar_select %p37, %s39, %s23
      %p41 = scmp.ge.s32.totalorder %s40, 2
      %s42 = scalar_select %p41, 0, %s40
      %s43 = ssub.s32 %s23, %s42
      %s44 = ssub.s32 %s24, %s38
      %s45 = sor.u32 %s43, %s44
      %p46 = scmp.eq.s32.totalorder %s45, 0
      %s48 = sadd.s32 %s47, 1
      %s49 = scalar_select %p46, %s47, %s48
      %p52 = pneg %p46
      %p53 = scmp.eq.s32.totalorder %s16, 1
      %p54 = por %p52, %p53
      %p55 = scmp.ne.s32.totalorder %s47, %s50
      %p56 = scmp.eq.s32.totalorder %s16, 0
      %p57 = por %p55, %p56
      %p58 = scmp.ne.s32.totalorder %s47, %s50
      %p59 = scmp.eq.s32.totalorder %s21, 1
      %p60 = por %p58, %p59
      %p61 = scmp.ne.s32.totalorder %s50, %s51
      %p62 = scmp.eq.s32.totalorder %s21, 0
      %p63 = por %p61, %p62
      %p64 = scmp.ne.s32.totalorder %s50, %s51
      %p65 = scmp.eq.s32.totalorder %s22, 1
      %p66 = por %p64, %p65
      %p68 = scmp.ne.s32.totalorder %s51, %s67
      %p69 = scmp.eq.s32.totalorder %s22, 0
      %p70 = por %p68, %p69
      %s71 = ssub.s32 %s25, %s34
      %p72 = scmp.eq.s32.totalorder %s71, 0
      %s74 = sadd.s32 %s73, 1
      %s75 = scalar_select %p72, %s73, %s74
      %p78 = pneg %p72
      %p79 = scmp.eq.s32.totalorder %s16, 1
      %p80 = por %p78, %p79
      %p81 = scmp.ne.s32.totalorder %s73, %s76
      %p82 = scmp.eq.s32.totalorder %s16, 0
      %p83 = por %p81, %p82
      %p84 = scmp.ne.s32.totalorder %s73, %s76
      %p85 = scmp.eq.s32.totalorder %s21, 1
      %p86 = por %p84, %p85
      %p87 = scmp.ne.s32.totalorder %s76, %s77
      %p88 = scmp.eq.s32.totalorder %s21, 0
      %p89 = por %p87, %p88
      %p90 = scmp.ne.s32.totalorder %s76, %s77
      %p91 = scmp.eq.s32.totalorder %s22, 1
      %p92 = por %p90, %p91
      %p94 = scmp.ne.s32.totalorder %s77, %s93
      %p95 = scmp.eq.s32.totalorder %s22, 0
      %p96 = por %p94, %p95
      %s97 = ssub.s32 %s25, %s34
      %p98 = scmp.eq.s32.totalorder %s97, 0
      %s100 = sadd.s32 %s99, 1
      %s101 = scalar_select %p98, %s99, %s100
      %p104 = pneg %p98
      %p105 = scmp.eq.s32.totalorder %s16, 1
      %p106 = por %p104, %p105
      %p107 = scmp.ne.s32.totalorder %s99, %s102
      %p108 = scmp.eq.s32.totalorder %s16, 0
      %p109 = por %p107, %p108
      %p110 = scmp.ne.s32.totalorder %s99, %s102
      %p111 = scmp.eq.s32.totalorder %s21, 1
      %p112 = por %p110, %p111
      %p113 = scmp.ne.s32.totalorder %s102, %s103
      %p114 = scmp.eq.s32.totalorder %s21, 0
      %p115 = por %p113, %p114
      %p116 = scmp.ne.s32.totalorder %s102, %s103
      %p117 = scmp.eq.s32.totalorder %s22, 1
      %p118 = por %p116, %p117
      %p120 = scmp.ne.s32.totalorder %s103, %s119
      %p121 = scmp.eq.s32.totalorder %s22, 0
      %p122 = por %p120, %p121
      %s123 = ssub.s32 %s23, %s42
      %s124 = ssub.s32 %s24, %s38
      %s125 = sor.u32 %s123, %s124
      %s126 = ssub.s32 %s25, %s34
      %s127 = sor.u32 %s125, %s126
      %p128 = scmp.eq.s32.totalorder %s127, 0
      %s130 = sadd.s32 %s129, 1
      %s131 = scalar_select %p128, %s129, %s130
      %p134 = pneg %p128
      %p135 = scmp.eq.s32.totalorder %s16, 1
      %p136 = por %p134, %p135
      %p137 = scmp.ne.s32.totalorder %s129, %s132
      %p138 = scmp.eq.s32.totalorder %s16, 0
      %p139 = por %p137, %p138
      %p140 = scmp.ne.s32.totalorder %s129, %s132
      %p141 = scmp.eq.s32.totalorder %s21, 1
      %p142 = por %p140, %p141
      %p143 = scmp.ne.s32.totalorder %s132, %s133
      %p144 = scmp.eq.s32.totalorder %s21, 0
      %p145 = por %p143, %p144
      %p146 = scmp.ne.s32.totalorder %s132, %s133
      %p147 = scmp.eq.s32.totalorder %s22, 1
      %p148 = por %p146, %p147
      %p150 = scmp.ne.s32.totalorder %s133, %s149
      %p151 = scmp.eq.s32.totalorder %s22, 0
      %p152 = por %p150, %p151
      %p153 = scmp.le.s32.totalorder 1, %s16
      %p154 = scmp.lt.s32.totalorder %s16, 3
      %p155 = pnand %p153, %p154
      %p156 = pneg %p155
      // Predicated region
      $region9: #{tpu_custom_call.1} parent=5 // pred_check
        _
      $region10: #{tpu_custom_call.1} parent=5 // pred_check_branch
        %158 = sbr.rel (%p155) target = $region12
      $region11: #{tpu_custom_call.1} parent=5 // pred_region
        %s159 = ssub.s32 %s16, 1
        // Predicated region
        $region13: #{tpu_custom_call.1} parent=11 // pred_check
          %p160 = pneg %p89
        $region14: #{tpu_custom_call.1} parent=11 // pred_check_branch
          %162 = sbr.rel (%p160) target = $region16
        $region15: #{tpu_custom_call.1} parent=11 // pred_region
          %s163 = smul.u32 3, %s28
          %s165 = ssub.s32 6144, 6144
          %166 = vsyncadd [#allocation6], %s165
          %s167 = smul.addr %s163, 128
          %s168 = scalar_lea.hbm %s1, %s167
          %s169 = sshll.u32 [#allocation5], 4
          %s170 = int_to_ptr.vmem [resolvable:$true] %s169
          %175 = dma.hbm_to_vmem [thread:$0]  %s168, 6144, %s170, [#allocation6], 384, 384, 24
        $region16: #{tpu_custom_call.1} parent=11 // pred_fallthru
          _
        // Predicated region
        $region17: #{tpu_custom_call.1} parent=11 // pred_check
          %p176 = pneg %p115
        $region18: #{tpu_custom_call.1} parent=11 // pred_check_branch
          %178 = sbr.rel (%p176) target = $region20
        $region19: #{tpu_custom_call.1} parent=11 // pred_region
          %s179 = smul.u32 3, %s28
          %p180 = scmp.lt.s32.totalorder %s179, 2
          %s181 = scalar_select %p180, %s179, 2
          %s182 = scalar_lea.vmem %s2, %s181
          %s183 = smul.u32 3, %s28
        $region20: #{tpu_custom_call.1} parent=11 // pred_fallthru
          _
      $region12: #{tpu_custom_call.1} parent=5 // pred_fallthru
        _
      %p184 = scmp.lt.s32.totalorder %s16, 2
      // Predicated region
      $region21: #{tpu_custom_call.1} parent=5 // pred_check
        %p185 = pneg %p184
      $region22: #{tpu_custom_call.1} parent=5 // pred_check_branch
        %187 = sbr.rel (%p185) target = $region24
      $region23: #{tpu_custom_call.1} parent=5 // pred_region
        // Predicated region
        $region25: #{tpu_custom_call.1} parent=23 // pred_check
          %p188 = pneg %p57
        $region26: #{tpu_custom_call.1} parent=23 // pred_check_branch
          %190 = sbr.rel (%p188) target = $region28
        $region27: #{tpu_custom_call.1} parent=23 // pred_region
          %s191 = sand.u32 %s47, 1
          %s192 = scalar_lea.sflag [#allocation3], %s191
          %s193 = sand.u32 %s47, 1
          %s194 = smul.addr %s193, 8
          %s195 = scalar_lea.vmem [#allocation2], %s194
          %s197 = ssub.s32 128, 128
          %198 = vsyncadd %s192, %s197
          %s199 = sadd.s32 %s24, %s23
          %s200 = smul.addr %s199, 128
          %s201 = scalar_lea.hbm %s0, %s200
          %s203 = sshll.u32 %s195, 4
          %s204 = int_to_ptr.vmem [resolvable:$true] %s203
          %206 = dma.hbm_to_vmem [thread:$0]  %s201, 128, %s204, %s192
        $region28: #{tpu_custom_call.1} parent=23 // pred_fallthru
          _
      $region24: #{tpu_custom_call.1} parent=5 // pred_fallthru
        _
      %p207 = scmp.le.s32.totalorder 1, %s16
      %p208 = scmp.lt.s32.totalorder %s16, 3
      %p209 = pnand %p207, %p208
      %p210 = pneg %p209
      // Predicated region
      $region29: #{tpu_custom_call.1} parent=5 // pred_check
        _
      $region30: #{tpu_custom_call.1} parent=5 // pred_check_branch
        %212 = sbr.rel (%p209) target = $region32
      $region31: #{tpu_custom_call.1} parent=5 // pred_region
        %s213 = ssub.s32 %s16, 1
        %s214 = sand.u32 %s50, 1
        %s215 = scalar_lea.sflag [#allocation3], %s214
        %s216 = sand.u32 %s50, 1
        %s217 = smul.addr %s216, 8
        %s218 = scalar_lea.vmem [#allocation2], %s217
        // Predicated region
        $region33: #{tpu_custom_call.1} parent=31 // pred_check
          %p219 = pneg %p63
        $region34: #{tpu_custom_call.1} parent=31 // pred_check_branch
          %221 = sbr.rel (%p219) target = $region36
        $region35: #{tpu_custom_call.1} parent=31 // pred_region
          %222 = dma.done %s215, 128
        $region36: #{tpu_custom_call.1} parent=31 // pred_fallthru
          _
        // Predicated region
        $region37: #{tpu_custom_call.1} parent=31 // pred_check
          %p223 = pneg %p89
        $region38: #{tpu_custom_call.1} parent=31 // pred_check_branch
          %225 = sbr.rel (%p223) target = $region40
        $region39: #{tpu_custom_call.1} parent=31 // pred_region
          %226 = dma.done [#allocation6], 6144
        $region40: #{tpu_custom_call.1} parent=31 // pred_fallthru
          _
        %s227 = sand.u32 %s50, 1
        %s228 = scalar_lea.sflag [#allocation3], %s227
        %s229 = sand.u32 %s50, 1
        %s230 = smul.addr %s229, 8
        %s231 = scalar_lea.vmem [#allocation2], %s230
        %p232 = pneg %p63
        %p233 = pneg %p60
        %p234 = pneg %p89
        %p235 = pneg %p86
        %s236 = smul.u32 3, %s28
        %p237 = scmp.lt.s32.totalorder %s236, 2
        %s238 = scalar_select %p237, %s236, 2
        %s239 = scalar_lea.vmem %s2, %s238
        %p240 = pneg %p115
        %p241 = pneg %p112
        %p242 = pneg %p145
        %p243 = pneg %p142
        %s244 = sand.u32 %s132, 1
        %s245 = scalar_lea.sflag [#allocation4], %s244
        %s246 = sand.u32 %s132, 1
        %s247 = smul.addr %s246, 24
        %s248 = scalar_lea.vmem [#allocation7], %s247
        %s249 = smul.u32 3, %s28
        %s250 = smul.u32 3, %s28
        %p251 = scmp.lt.s32.totalorder %s250, 2
        %s252 = scalar_select %p251, %s250, 2
        %s253 = scalar_lea.vmem %s2, %s252
        %s254 = smul.u32 3, %s28
        %s255 = smul.u32 3, %s28
        %v256 = vld [vmem:[%s218] sm:$0xff]
        %v257 = vld [vmem:[#allocation5] sm:$0xff]
        %v258 = vld [vmem:[#allocation5 + $0x8] sm:$0xff]
        %v259 = vld [vmem:[#allocation5 + $0x10] sm:$0xff]
        %v260 = vld [vmem:[#allocation5 + $0x18] sm:$0xff]
        %v261 = vld [vmem:[#allocation5 + $0x20] sm:$0xff]
        %v262 = vld [vmem:[#allocation5 + $0x28] sm:$0xff]
        %v263 = vld [vmem:[#allocation5 + $0x30] sm:$0xff]
        %v264 = vld [vmem:[#allocation5 + $0x38] sm:$0xff]
        %v265 = vld [vmem:[#allocation5 + $0x40] sm:$0xff]
        %v266 = vld [vmem:[#allocation5 + $0x48] sm:$0xff]
        %v267 = vld [vmem:[#allocation5 + $0x50] sm:$0xff]
        %v268 = vld [vmem:[#allocation5 + $0x58] sm:$0xff]
        %v269 = vld [vmem:[#allocation5 + $0x60] sm:$0xff]
        %v270 = vld [vmem:[#allocation5 + $0x68] sm:$0xff]
        %v271 = vld [vmem:[#allocation5 + $0x70] sm:$0xff]
        %v272 = vld [vmem:[#allocation5 + $0x78] sm:$0xff]
        %v273 = vld [vmem:[#allocation5 + $0x80] sm:$0xff]
        %v274 = vld [vmem:[#allocation5 + $0x88] sm:$0xff]
        %v275 = vld [vmem:[#allocation5 + $0x90] sm:$0xff]
        %v276 = vld [vmem:[#allocation5 + $0x98] sm:$0xff]
        %v277 = vld [vmem:[#allocation5 + $0xa0] sm:$0xff]
        %v278 = vld [vmem:[#allocation5 + $0xa8] sm:$0xff]
        %v279 = vld [vmem:[#allocation5 + $0xb0] sm:$0xff]
        %v280 = vld [vmem:[#allocation5 + $0xb8] sm:$0xff]
        %v281 = vld [vmem:[#allocation5 + $0xc0] sm:$0xff]
        %v282 = vld [vmem:[#allocation5 + $0xc8] sm:$0xff]
        %v283 = vld [vmem:[#allocation5 + $0xd0] sm:$0xff]
        %v284 = vld [vmem:[#allocation5 + $0xd8] sm:$0xff]
        %v285 = vld [vmem:[#allocation5 + $0xe0] sm:$0xff]
        %v286 = vld [vmem:[#allocation5 + $0xe8] sm:$0xff]
        %v287 = vld [vmem:[#allocation5 + $0xf0] sm:$0xff]
        %v288 = vld [vmem:[#allocation5 + $0xf8] sm:$0xff]
        %v289 = vld [vmem:[#allocation5 + $0x100] sm:$0xff]
        %v290 = vld [vmem:[#allocation5 + $0x108] sm:$0xff]
        %v291 = vld [vmem:[#allocation5 + $0x110] sm:$0xff]
        %v292 = vld [vmem:[#allocation5 + $0x118] sm:$0xff]
        %v293 = vld [vmem:[#allocation5 + $0x120] sm:$0xff]
        %v294 = vld [vmem:[#allocation5 + $0x128] sm:$0xff]
        %v295 = vld [vmem:[#allocation5 + $0x130] sm:$0xff]
        %v296 = vld [vmem:[#allocation5 + $0x138] sm:$0xff]
        %v297 = vld [vmem:[#allocation5 + $0x140] sm:$0xff]
        %v298 = vld [vmem:[#allocation5 + $0x148] sm:$0xff]
        %v299 = vld [vmem:[#allocation5 + $0x150] sm:$0xff]
        %v300 = vld [vmem:[#allocation5 + $0x158] sm:$0xff]
        %v301 = vld [vmem:[#allocation5 + $0x160] sm:$0xff]
        %v302 = vld [vmem:[#allocation5 + $0x168] sm:$0xff]
        %v303 = vld [vmem:[#allocation5 + $0x170] sm:$0xff]
        %v304 = vld [vmem:[#allocation5 + $0x178] sm:$0xff]
        %v305 = vld [vmem:[%s253] sm:$0x7]
        %v307 = vlaneseq
        %v308 = vshrl.u32 %v307, 7
        %v309 = vsub.s32 0, %v308
        %v310 = vrot.slane %v305, %v309
        %v311 = vlaneseq
        %v312 = vshrl.u32 %v311, 7
        %v313 = vsub.s32 1, %v312
        %v314 = vrot.slane %v305, %v313
        %v315 = vlaneseq
        %v316 = vshrl.u32 %v315, 7
        %v317 = vsub.s32 2, %v316
        %v318 = vrot.slane %v305, %v317
        %322 = vmatprep.subr.mxu0 %v258
        %323 = vmatpush1.msra.mxu0 %v257
        %324 = vmatprep.subr.mxu0 %v261
        %325 = vmatpush1.msra.mxu0 %v260
        %326 = vmatprep.subr.mxu0 %v264
        %327 = vmatpush1.msra.mxu0 %v263
        %328 = vmatprep.subr.mxu0 %v267
        %329 = vmatpush1.msra.mxu0 %v266
        %330 = vmatprep.subr.mxu0 %v270
        %331 = vmatpush1.msra.mxu0 %v269
        %332 = vmatprep.subr.mxu0 %v273
        %333 = vmatpush1.msra.mxu0 %v272
        %334 = vmatprep.subr.mxu0 %v276
        %335 = vmatpush1.msra.mxu0 %v275
        %336 = vmatprep.subr.mxu0 %v279
        %337 = vmatpush1.msra.mxu0 %v278
        %338 = vmatprep.subr.mxu0 %v282
        %339 = vmatpush1.msra.mxu0 %v281
        %340 = vmatprep.subr.mxu0 %v285
        %341 = vmatpush1.msra.mxu0 %v284
        %342 = vmatprep.subr.mxu0 %v288
        %343 = vmatpush1.msra.mxu0 %v287
        %344 = vmatprep.subr.mxu0 %v291
        %345 = vmatpush1.msra.mxu0 %v290
        %346 = vmatprep.subr.mxu0 %v294
        %347 = vmatpush1.msra.mxu0 %v293
        %348 = vmatprep.subr.mxu0 %v297
        %349 = vmatpush1.msra.mxu0 %v296
        %350 = vmatprep.subr.mxu0 %v300
        %351 = vmatpush1.msra.mxu0 %v299
        %352 = vmatprep.subr.mxu0 %v303
        %353 = vmatpush1.msra.mxu0 %v302
        %354 = vmatprep.subr.mxu0 0.0
        %355 = vmatpush1.msra.mxu0 0.0
        %356 = vmatprep.subr.mxu0 0.0
        %357 = vmatpush1.msra.mxu0 0.0
        %358 = vmatprep.subr.mxu0 0.0
        %359 = vmatpush1.msra.mxu0 0.0
        %360 = vmatprep.subr.mxu0 0.0
        %361 = vmatpush1.msra.mxu0 0.0
        %362 = vmatprep.subr.mxu0 0.0
        %363 = vmatpush1.msra.mxu0 0.0
        %364 = vmatprep.subr.mxu0 0.0
        %365 = vmatpush1.msra.mxu0 0.0
        %366 = vmatprep.subr.mxu0 0.0
        %367 = vmatpush1.msra.mxu0 0.0
        %368 = vmatprep.subr.mxu0 0.0
        %369 = vmatpush1.msra.mxu0 0.0
        %370 = vmatprep.subr.mxu0 0.0
        %371 = vmatpush1.msra.mxu0 0.0
        %372 = vmatprep.subr.mxu0 0.0
        %373 = vmatpush1.msra.mxu0 0.0
        %374 = vmatprep.subr.mxu0 0.0
        %375 = vmatpush1.msra.mxu0 0.0
        %376 = vmatprep.subr.mxu0 0.0
        %377 = vmatpush1.msra.mxu0 0.0
        %378 = vmatprep.subr.mxu0 0.0
        %379 = vmatpush1.msra.mxu0 0.0
        %380 = vmatprep.subr.mxu0 0.0
        %381 = vmatpush1.msra.mxu0 0.0
        %382 = vmatprep.subr.mxu0 0.0
        %383 = vmatpush1.msra.mxu0 0.0
        %384 = vmatprep.subr.mxu0 0.0
        %385 = vmatpush1.msra.mxu0 0.0
        %386 = vmatprep.mubr.f32.mxu0 0.0
        %387 = vmatmul.mubr.f32.gmra.mrb[0].mxu0 %v256
        %v388 = vpop.f32.mrb[0].mxu0
        %v389 = vadd.f32 %v310, %v388
        %v390 = vpop.f32.mrb[0].mxu0
        %v391 = vadd.f32 %v314, %v390
        %392 = vdwg.mxu0
        %393 = vmatprep.subr.mxu0 0.0
        %394 = vmatpush1.msra.mxu0 %v259
        %395 = vmatprep.subr.mxu0 0.0
        %396 = vmatpush1.msra.mxu0 %v262
        %397 = vmatprep.subr.mxu0 0.0
        %398 = vmatpush1.msra.mxu0 %v265
        %399 = vmatprep.subr.mxu0 0.0
        %400 = vmatpush1.msra.mxu0 %v268
        %401 = vmatprep.subr.mxu0 0.0
        %402 = vmatpush1.msra.mxu0 %v271
        %403 = vmatprep.subr.mxu0 0.0
        %404 = vmatpush1.msra.mxu0 %v274
        %405 = vmatprep.subr.mxu0 0.0
        %406 = vmatpush1.msra.mxu0 %v277
        %407 = vmatprep.subr.mxu0 0.0
        %408 = vmatpush1.msra.mxu0 %v280
        %409 = vmatprep.subr.mxu0 0.0
        %410 = vmatpush1.msra.mxu0 %v283
        %411 = vmatprep.subr.mxu0 0.0
        %412 = vmatpush1.msra.mxu0 %v286
        %413 = vmatprep.subr.mxu0 0.0
        %414 = vmatpush1.msra.mxu0 %v289
        %415 = vmatprep.subr.mxu0 0.0
        %416 = vmatpush1.msra.mxu0 %v292
        %417 = vmatprep.subr.mxu0 0.0
        %418 = vmatpush1.msra.mxu0 %v295
        %419 = vmatprep.subr.mxu0 0.0
        %420 = vmatpush1.msra.mxu0 %v298
        %421 = vmatprep.subr.mxu0 0.0
        %422 = vmatpush1.msra.mxu0 %v301
        %423 = vmatprep.subr.mxu0 0.0
        %424 = vmatpush1.msra.mxu0 %v304
        %425 = vmatprep.subr.mxu0 0.0
        %426 = vmatpush1.msra.mxu0 0.0
        %427 = vmatprep.subr.mxu0 0.0
        %428 = vmatpush1.msra.mxu0 0.0
        %429 = vmatprep.subr.mxu0 0.0
        %430 = vmatpush1.msra.mxu0 0.0
        %431 = vmatprep.subr.mxu0 0.0
        %432 = vmatpush1.msra.mxu0 0.0
        %433 = vmatprep.subr.mxu0 0.0
        %434 = vmatpush1.msra.mxu0 0.0
        %435 = vmatprep.subr.mxu0 0.0
        %436 = vmatpush1.msra.mxu0 0.0
        %437 = vmatprep.subr.mxu0 0.0
        %438 = vmatpush1.msra.mxu0 0.0
        %439 = vmatprep.subr.mxu0 0.0
        %440 = vmatpush1.msra.mxu0 0.0
        %441 = vmatprep.subr.mxu0 0.0
        %442 = vmatpush1.msra.mxu0 0.0
        %443 = vmatprep.subr.mxu0 0.0
        %444 = vmatpush1.msra.mxu0 0.0
        %445 = vmatprep.subr.mxu0 0.0
        %446 = vmatpush1.msra.mxu0 0.0
        %447 = vmatprep.subr.mxu0 0.0
        %448 = vmatpush1.msra.mxu0 0.0
        %449 = vmatprep.subr.mxu0 0.0
        %450 = vmatpush1.msra.mxu0 0.0
        %451 = vmatprep.subr.mxu0 0.0
        %452 = vmatpush1.msra.mxu0 0.0
        %453 = vmatprep.subr.mxu0 0.0
        %454 = vmatpush1.msra.mxu0 0.0
        %455 = vmatprep.subr.mxu0 0.0
        %456 = vmatpush1.msra.mxu0 0.0
        %457 = vmatprep.mubr.f32.mxu0 0.0
        %458 = vmatmul.mubr.f32.gmra.mrb[0].mxu0 %v256
        %v459 = vpop.f32.mrb[0].mxu0
        %v460 = vadd.f32 %v318, %v459
        %v461 = vpop.f32.mrb[0].mxu0
        %462 = vdwg.mxu0
        %463 = vst [vmem:[%s248] sm:$0xff] %v389
        %464 = vst [vmem:[%s248 + $0x8] sm:$0xff] %v391
        %465 = vst [vmem:[%s248 + $0x10] sm:$0xff] %v460
        %s466 = sand.u32 %s132, 1
        %s467 = scalar_lea.sflag [#allocation4], %s466
        %s468 = sand.u32 %s132, 1
        %s469 = smul.addr %s468, 24
        %s470 = scalar_lea.vmem [#allocation7], %s469
        // Predicated region
        $region41: #{tpu_custom_call.1} parent=31 // pred_check
          %p471 = pneg %p142
        $region42: #{tpu_custom_call.1} parent=31 // pred_check_branch
          %473 = sbr.rel (%p471) target = $region44
        $region43: #{tpu_custom_call.1} parent=31 // pred_region
          %s474 = smul.u32 3, %s28
          %s476 = ssub.s32 384, 384
          %477 = vsyncadd %s467, %s476
          %s478 = smul.addr %s27, 3
          %s479 = sadd.s32 %s474, %s478
          %s480 = smul.addr %s26, 3
          %s481 = sadd.s32 %s479, %s480
          %s482 = smul.addr %s481, 128
          %s483 = scalar_lea.hbm %s3, %s482
          %s485 = sshll.u32 %s470, 4
          %s486 = int_to_ptr.vmem [resolvable:$true] %s485
          %488 = dma.vmem_to_hbm [thread:$0]  %s486, 384, %s483, %s467
        $region44: #{tpu_custom_call.1} parent=31 // pred_fallthru
          _
      $region32: #{tpu_custom_call.1} parent=5 // pred_fallthru
        _
      %p489 = scmp.le.s32.totalorder 2, %s16
      // Predicated region
      $region45: #{tpu_custom_call.1} parent=5 // pred_check
        %p490 = pneg %p489
      $region46: #{tpu_custom_call.1} parent=5 // pred_check_branch
        %492 = sbr.rel (%p490) target = $region48
      $region47: #{tpu_custom_call.1} parent=5 // pred_region
        %s493 = ssub.s32 %s16, 2
        // Predicated region
        $region49: #{tpu_custom_call.1} parent=47 // pred_check
          %p494 = pneg %p148
        $region50: #{tpu_custom_call.1} parent=47 // pred_check_branch
          %496 = sbr.rel (%p494) target = $region52
        $region51: #{tpu_custom_call.1} parent=47 // pred_region
          %s497 = sand.u32 %s133, 1
          %s498 = scalar_lea.sflag [#allocation4], %s497
          %s499 = sand.u32 %s133, 1
          %s500 = smul.addr %s499, 24
          %s501 = scalar_lea.vmem [#allocation7], %s500
          %502 = dma.done %s498, 384
        $region52: #{tpu_custom_call.1} parent=47 // pred_fallthru
          _
      $region48: #{tpu_custom_call.1} parent=5 // pred_fallthru
        _
    $region6: #{tpu_custom_call.1} parent=1 // loop_footer
      %s20 = sadd.s32 1, %s16
    $region7: #{tpu_custom_call.1} parent=1 // loop_footer_branch
      %15 = sbr.rel target = $region3
    $region8: #{tpu_custom_call.1} parent=1 // loop_exit
      _
    %503 = vsyncpa [#allocation3], 1
    %s504 = scalar_lea.sflag [#allocation3], 1
    %505 = vsyncpa %s504, 1
    %506 = vsyncpa [#allocation6], 1
    %507 = vsyncpa [#allocation4], 1
    %s508 = scalar_lea.sflag [#allocation4], 1
    %509 = vsyncpa %s508, 1

</llo_original>
